<compile_context>
chip_gen: v5e
topology: v5e:2x2
jax: 0.10.0
libtpu: 0.0.40
codegen_flags: <defaults>
</compile_context>

<pallas_src>
import functools

import jax
import jax.numpy as jnp
from jax.experimental import pallas as pl
from jax.experimental.pallas import tpu as pltpu


def _round_up(x, m):
    return (x + m - 1) // m * m


def _apply_act(h, act):
    if act is None:
        return h
    if act == "relu":
        return jnp.maximum(h, 0.0)
    if act == "tanh":
        return jnp.tanh(h)
    if act == "sigmoid":
        return jax.nn.sigmoid(h)
    raise ValueError(f"unsupported activation: {act!r}")


def _fc_fused_kernel(*refs, num_layers, acts, tm, chunk):
    """Fused stack of (1x1 conv + folded-BN bias + activation) layers.

    refs layout: x_ref, w_0, b_0, ..., w_{L-1}, b_{L-1}, o_ref
      x_ref : (C_in, TM)        channels-first row tile (positions on lanes)
      w_l   : (C_out_l, C_in_l) conv weight with BN scale folded in
      b_l   : (C_out_l, 1)      conv bias with BN scale/shift folded in
      o_ref : (C_last, TM)
    The tile is processed in `chunk`-wide lane sub-slices so intermediates
    stay in vregs instead of becoming large VMEM temps.
    """
    x_ref = refs[0]
    o_ref = refs[-1]
    wb = refs[1:-1]

    # Weights/biases are tiny; load them once per grid step.
    ws = [wb[2 * li][...] for li in range(num_layers)]
    bs = [wb[2 * li + 1][...] for li in range(num_layers)]

    def compute_cols(col0, width):
        h = x_ref[:, pl.ds(col0, width)]
        for li in range(num_layers):
            # (C_out, C_in) @ (C_in, width) -> (C_out, width), f32 acc on MXU.
            h = jnp.dot(ws[li], h, preferred_element_type=jnp.float32) + bs[li]
            h = _apply_act(h, acts[li])
        o_ref[:, pl.ds(col0, width)] = h.astype(o_ref.dtype)

    nfull = tm // chunk
    rem = tm - nfull * chunk
    if nfull == 1:
        compute_cols(0, chunk)
    elif nfull > 1:
        @pl.loop(0, nfull)
        def _(i):
            compute_cols(pl.multiple_of(i * chunk, chunk), chunk)
    if rem:
        compute_cols(nfull * chunk, rem)


def _fc_fused_call(x_cm, params, acts, tm, chunk):
    """x_cm: (C_in, M) channels-first, M % 128 == 0, tm lane-aligned."""
    c_in, m_cols = x_cm.shape
    num_layers = len(params)
    c_last = params[-1][0].shape[0]

    in_specs = [pl.BlockSpec((c_in, tm), lambda i: (0, i))]
    operands = [x_cm]
    for w, b in params:
        # Tiny full-array blocks with constant index_map: stay VMEM-resident
        # across the grid (no re-DMA per step).
        in_specs.append(pl.BlockSpec(w.shape, lambda i: (0, 0)))
        in_specs.append(pl.BlockSpec(b.shape, lambda i: (0, 0)))
        operands.append(w)
        operands.append(b)

    # Advisory cost estimate so XLA can overlap this bandwidth-bound call.
    flops = 0
    transcendentals = 0
    c_prev = c_in
    for (w, _), act in zip(params, acts):
        c_out = w.shape[0]
        flops += 2 * m_cols * c_prev * c_out
        if act in ("tanh", "sigmoid"):
            transcendentals += m_cols * c_out
        c_prev = c_out
    bytes_accessed = 4 * m_cols * (c_in + c_last) + sum(
        (w.size + b.size) * 4 for w, b in params
    )

    kernel = functools.partial(
        _fc_fused_kernel,
        num_layers=num_layers,
        acts=tuple(acts),
        tm=tm,
        chunk=chunk,
    )
    return pl.pallas_call(
        kernel,
        out_shape=jax.ShapeDtypeStruct((c_last, m_cols), jnp.float32),
        grid_spec=pl.GridSpec(
            grid=(pl.cdiv(m_cols, tm),),
            in_specs=in_specs,
            out_specs=pl.BlockSpec((c_last, tm), lambda i: (0, i)),
        ),
        compiler_params=pltpu.CompilerParams(
            dimension_semantics=("parallel",),
            vmem_limit_bytes=32 << 20,   # safe on v5e/v6e/v7x; v5e default 16 MiB is tight
        ),
        cost_estimate=pl.CostEstimate(
            flops=flops,
            transcendentals=transcendentals,
            bytes_accessed=bytes_accessed,
        ),
    )(*operands)


def _pick_tm(m_al, tm_max):
    """Row-tile width.  `m_al` is 128-aligned; result is <= m_al."""
    if m_al <= tm_max:
        if m_al >= 8192:
            # Keep >= 2 grid steps so v7x's second TensorCore gets work.
            return _round_up((m_al + 1) // 2, 128)
        return m_al
    return tm_max


def make_fc_params(key, input_dims, units, activations, *, bn=True, bn_eps=1e-3):
    """Deterministic init matching the PyTorch module (eval mode), BN folded in.

    Conv2d weight (c_out, c_in, 1, 1): xavier_normal_, std = sqrt(2/(c_in+c_out)).
    Conv2d bias: 0.  BatchNorm2d defaults: gamma=1, beta=0, mean=0, var=1.
    BN (applied only when activation is not None, like the module) is folded:
      w' = scale * w,  b' = scale * b + shift,
      scale = gamma / sqrt(var + eps),  shift = beta - mean * scale.
    """
    params = []
    c_in = input_dims
    for c_out, act in zip(units, activations):
        key, wkey = jax.random.split(key)
        std = (2.0 / (c_in + c_out)) ** 0.5
        w = jax.random.normal(wkey, (c_out, c_in), dtype=jnp.float32) * std
        b = jnp.zeros((c_out, 1), dtype=jnp.float32)
        if bn and act is not None:
            gamma = jnp.ones((c_out, 1), jnp.float32)
            beta = jnp.zeros((c_out, 1), jnp.float32)
            running_mean = jnp.zeros((c_out, 1), jnp.float32)
            running_var = jnp.ones((c_out, 1), jnp.float32)
            scale = gamma / jnp.sqrt(running_var + bn_eps)
            shift = beta - running_mean * scale
            w = w * scale            # broadcast (c_out,1) over (c_out,c_in)
            b = b * scale + shift
        params.append((w, b))
        c_in = c_out
    return params


def fc_forward_cm(x_cm, params, activations, *, tm_max=32768):
    """Preferred entry point: x_cm is channels-first (C_in, M); returns (C_last, M).

    Keeping the (C, M) layout across the surrounding graph boundary avoids the
    extra HBM transpose passes the NHWC wrapper has to pay.
    """
    c_in, m = x_cm.shape
    # Only a tiny (<=127 col) pad when M isn't lane-aligned; no full-tile pad --
    # the grid uses cdiv and Pallas masks the partial final block.
    m_al = _round_up(m, 128)
    if m_al != m:
        x_cm = jnp.pad(x_cm, ((0, 0), (0, m_al - m)))
    tm = _pick_tm(m_al, _round_up(tm_max, 512))
    chunk = min(512, tm)
    out_cm = _fc_fused_call(x_cm, params, list(activations), tm, chunk)
    return out_cm[:, :m] if m_al != m else out_cm


def fc_forward(x, params, activations, *, tm_max=32768):
    """NHWC wrapper matching the PyTorch module's (B, H, W, C) contract.

    NOTE: the two layout passes here (NHWC -> (C, M) and back) are separate XLA
    HBM passes; callers that can keep a channels-first layout should use
    fc_forward_cm() directly so the kernel's lane-dense layout is free.
    """
    b, h, w_dim, c_in = x.shape
    m = b * h * w_dim
    x_cm = jnp.transpose(x.reshape(m, c_in))          # (c_in, m)
    out_cm = fc_forward_cm(x_cm, params, activations, tm_max=tm_max)
    c_last = out_cm.shape[0]
    return jnp.transpose(out_cm).reshape(b, h, w_dim, c_last)


def fc_reference(x, params, activations):
    """Plain-JAX reference of the same forward pass (for a sanity check)."""
    b, h, w_dim, c_in = x.shape
    rows = x.reshape(b * h * w_dim, c_in).astype(jnp.float32)
    for (w, bias), act in zip(params, activations):
        rows = rows @ w.T + bias[:, 0]
        rows = _apply_act(rows, act)
    return rows.reshape(b, h, w_dim, -1)


if __name__ == "__main__":
    key = jax.random.PRNGKey(0)

    # FC(input_dims=4, units=[32, 16], activations=[nn.ReLU, nn.ReLU],
    #    bn=True, bn_decay=0.1, use_bias=True), eval mode.
    C_IN = 4
    UNITS = [32, 16]
    ACTIVATIONS = ["relu", "relu"]

    key, pkey = jax.random.split(key)
    params = make_fc_params(pkey, C_IN, UNITS, ACTIVATIONS, bn=True)

    # 1) Small NHWC shape consistent with the module (batch, nodes, time, feat).
    key, xkey = jax.random.split(key)
    x_small = jax.random.normal(xkey, (2, 16, 8, C_IN), dtype=jnp.float32)
    out_small = jax.block_until_ready(fc_forward(x_small, params, ACTIVATIONS))
    ref_small = fc_reference(x_small, params, ACTIVATIONS)
    assert out_small.shape == (2, 16, 8, UNITS[-1]), out_small.shape
    assert jnp.allclose(out_small, ref_small, atol=1e-5, rtol=1e-5), "small mismatch"

    # 2) Larger shape that exercises the multi-step grid, the in-kernel
    #    512-column chunk loop and a masked partial final block
    #    (M = 9088 -> tm = 4608 -> 2 grid steps, last one partial).
    key, xkey = jax.random.split(key)
    x_big = jax.random.normal(xkey, (2, 71, 64, C_IN), dtype=jnp.float32)
    out_big = jax.block_until_ready(fc_forward(x_big, params, ACTIVATIONS))
    ref_big = fc_reference(x_big, params, ACTIVATIONS)
    assert out_big.shape == (2, 71, 64, UNITS[-1]), out_big.shape
    assert jnp.allclose(out_big, ref_big, atol=1e-5, rtol=1e-5), "big mismatch"

    print("KERNEL_OK")
</pallas_src>

<mosaic_0001>
module attributes {stable_mosaic.version = 11 : i64} {
  func.func @_fc_fused_kernel(%arg0: i32, %arg1: memref<4x256xf32, #tpu.memory_space<vmem>>, %arg2: memref<32x4xf32, #tpu.memory_space<vmem>>, %arg3: memref<32x1xf32, #tpu.memory_space<vmem>>, %arg4: memref<16x32xf32, #tpu.memory_space<vmem>>, %arg5: memref<16x1xf32, #tpu.memory_space<vmem>>, %arg6: memref<16x256xf32, #tpu.memory_space<vmem>>) attributes {dimension_semantics = [#tpu.dimension_semantics<parallel>], iteration_bounds = array<i64: 1>, scalar_prefetch = 0 : i64, scratch_operands = 0 : i64, tpu.core_type = #tpu.core_type<tc>, window_params = [{transform_indices = @transform_0, window_bounds = array<i64: 4, 256>}, {pipeline_mode = #tpu.pipeline_mode<synchronous>, transform_indices = @transform_1, window_bounds = array<i64: 32, 4>}, {pipeline_mode = #tpu.pipeline_mode<synchronous>, transform_indices = @transform_2, window_bounds = array<i64: 32, 1>}, {pipeline_mode = #tpu.pipeline_mode<synchronous>, transform_indices = @transform_3, window_bounds = array<i64: 16, 32>}, {pipeline_mode = #tpu.pipeline_mode<synchronous>, transform_indices = @transform_4, window_bounds = array<i64: 16, 1>}, {transform_indices = @transform_5, window_bounds = array<i64: 16, 256>}]} {
    %c0 = arith.constant 0 : index
    %c0_0 = arith.constant 0 : index
    %0 = vector.load %arg2[%c0, %c0_0] : memref<32x4xf32, #tpu.memory_space<vmem>>, vector<32x4xf32>
    %c0_1 = arith.constant 0 : index
    %c0_2 = arith.constant 0 : index
    %1 = vector.load %arg4[%c0_1, %c0_2] : memref<16x32xf32, #tpu.memory_space<vmem>>, vector<16x32xf32>
    %c0_3 = arith.constant 0 : index
    %c0_4 = arith.constant 0 : index
    %2 = vector.load %arg3[%c0_3, %c0_4] : memref<32x1xf32, #tpu.memory_space<vmem>>, vector<32x1xf32>
    %c0_5 = arith.constant 0 : index
    %c0_6 = arith.constant 0 : index
    %3 = vector.load %arg5[%c0_5, %c0_6] : memref<16x1xf32, #tpu.memory_space<vmem>>, vector<16x1xf32>
    %c0_7 = arith.constant 0 : index
    %c0_8 = arith.constant 0 : index
    %4 = vector.load %arg1[%c0_7, %c0_8] : memref<4x256xf32, #tpu.memory_space<vmem>>, vector<4x256xf32>
    %cst = arith.constant dense<0.000000e+00> : vector<32x256xf32>
    %5 = tpu.matmul %0, %4, %cst {dimension_numbers = #tpu.dot_dimension_numbers<[1], [0], [0], [1], [0, 0, 1, 1], [], []>} : vector<32x4xf32>, vector<4x256xf32>, vector<32x256xf32> -> vector<32x256xf32>
    %6 = vector.broadcast %2 : vector<32x1xf32> to vector<32x256xf32>
    %7 = arith.addf %5, %6 : vector<32x256xf32>
    %cst_9 = arith.constant 0.000000e+00 : f32
    %8 = vector.broadcast %cst_9 : f32 to vector<32x256xf32>
    %9 = arith.maximumf %7, %8 : vector<32x256xf32>
    %cst_10 = arith.constant dense<0.000000e+00> : vector<16x256xf32>
    %10 = tpu.matmul %1, %9, %cst_10 {dimension_numbers = #tpu.dot_dimension_numbers<[1], [0], [0], [1], [0, 0, 1, 1], [], []>} : vector<16x32xf32>, vector<32x256xf32>, vector<16x256xf32> -> vector<16x256xf32>
    %11 = vector.broadcast %3 : vector<16x1xf32> to vector<16x256xf32>
    %12 = arith.addf %10, %11 : vector<16x256xf32>
    %cst_11 = arith.constant 0.000000e+00 : f32
    %13 = vector.broadcast %cst_11 : f32 to vector<16x256xf32>
    %14 = arith.maximumf %12, %13 : vector<16x256xf32>
    %c0_12 = arith.constant 0 : index
    %c0_13 = arith.constant 0 : index
    %15 = vector.load %arg6[%c0_12, %c0_13] : memref<16x256xf32, #tpu.memory_space<vmem>>, vector<16x256xf32>
    tpu.vector_store %arg6[%c0_12, %c0_13], %14 {strides = array<i32>} : memref<16x256xf32, #tpu.memory_space<vmem>>, vector<16x256xf32>,
    return
  }
  func.func @transform_0(%arg0: i32) -> (i32, i32) {
    %c0_i32 = arith.constant 0 : i32
    %c0_i32_0 = arith.constant 0 : i32
    return %c0_i32, %arg0 : i32, i32
  }
  func.func @transform_1(%arg0: i32) -> (i32, i32) {
    %c0_i32 = arith.constant 0 : i32
    %c0_i32_0 = arith.constant 0 : i32
    %c0_i32_1 = arith.constant 0 : i32
    return %c0_i32, %c0_i32_0 : i32, i32
  }
  func.func @transform_2(%arg0: i32) -> (i32, i32) {
    %c0_i32 = arith.constant 0 : i32
    %c0_i32_0 = arith.constant 0 : i32
    %c0_i32_1 = arith.constant 0 : i32
    return %c0_i32, %c0_i32_0 : i32, i32
  }
  func.func @transform_3(%arg0: i32) -> (i32, i32) {
    %c0_i32 = arith.constant 0 : i32
    %c0_i32_0 = arith.constant 0 : i32
    %c0_i32_1 = arith.constant 0 : i32
    return %c0_i32, %c0_i32_0 : i32, i32
  }
  func.func @transform_4(%arg0: i32) -> (i32, i32) {
    %c0_i32 = arith.constant 0 : i32
    %c0_i32_0 = arith.constant 0 : i32
    %c0_i32_1 = arith.constant 0 : i32
    return %c0_i32, %c0_i32_0 : i32, i32
  }
  func.func @transform_5(%arg0: i32) -> (i32, i32) {
    %c0_i32 = arith.constant 0 : i32
    %c0_i32_0 = arith.constant 0 : i32
    return %c0_i32, %arg0 : i32, i32
  }
}

</mosaic_0001>

<llo_original>
// kernel: tpu_custom_call.1
$region0: #{tpu_custom_call.1}
  #allocation0 [shape = 'u32[]', space=smem, size = 0x4, offset = 0x4, fixed_abs, tag = 'smem constant byte address 0x4 - core index']
  #allocation1 [shape = 'u32[72,128]{1,0:T(1,128)}', space=vmem, size = 0x9000, scoped, tag = 'internal scratch']
  %s0 = inlined_call_operand.vmem [shape: f32[4,256], index: 0, kind: input, shape index: {}]
  %s1 = inlined_call_operand.vmem [shape: f32[32,4], index: 1, kind: input, shape index: {}]
  %s2 = inlined_call_operand.vmem [shape: f32[32,1], index: 2, kind: input, shape index: {}]
  %s3 = inlined_call_operand.vmem [shape: f32[16,32], index: 3, kind: input, shape index: {}]
  %s4 = inlined_call_operand.vmem [shape: f32[16,1], index: 4, kind: input, shape index: {}]
  %s5 = inlined_call_operand.hbm [shape: f32[16,256], index: 5, kind: output, shape index: {}]
  %s6 = sld [smem:[#allocation0]]
  $region30: #{tpu_custom_call.1} parent=0
    _
  %s8 = ssub.s32 1, %s6
  %s9 = scalar_select 0, %s8, %s6
  $region1: #{tpu_custom_call.1} parent=0
    #allocation2 [shape = 'u8[16384]{0}', space=vmem, size = 0x4000, scoped, tag = 'output window, operand 0, single buffered']
    #allocation3 [shape = 's32[1]{0}', space=sflag, size = 0x4, scoped, tag = 'scoped memory for tpu_custom_call.1']
    %10 = vsyncpa [#allocation3], 0
    // Predicated region
    $region2: #{tpu_custom_call.1} parent=1 // pred_check
      _
    $region3: #{tpu_custom_call.1} parent=1 // pred_check_branch
      %12 = sbr.rel (0) target = $region5
    $region4: #{tpu_custom_call.1} parent=1 // pred_region
      _
    $region5: #{tpu_custom_call.1} parent=1 // pred_fallthru
      _
    // Predicated region
    $region6: #{tpu_custom_call.1} parent=1 // pred_check
      _
    $region7: #{tpu_custom_call.1} parent=1 // pred_check_branch
      %14 = sbr.rel (0) target = $region9
    $region8: #{tpu_custom_call.1} parent=1 // pred_region
      _
    $region9: #{tpu_custom_call.1} parent=1 // pred_fallthru
      _
    // Predicated region
    $region10: #{tpu_custom_call.1} parent=1 // pred_check
      _
    $region11: #{tpu_custom_call.1} parent=1 // pred_check_branch
      %16 = sbr.rel (0) target = $region13
    $region12: #{tpu_custom_call.1} parent=1 // pred_region
      _
    $region13: #{tpu_custom_call.1} parent=1 // pred_fallthru
      _
    // Predicated region
    $region14: #{tpu_custom_call.1} parent=1 // pred_check
      _
    $region15: #{tpu_custom_call.1} parent=1 // pred_check_branch
      %18 = sbr.rel (0) target = $region17
    $region16: #{tpu_custom_call.1} parent=1 // pred_region
      _
    $region17: #{tpu_custom_call.1} parent=1 // pred_fallthru
      _
    // Predicated region
    $region18: #{tpu_custom_call.1} parent=1 // pred_check
      _
    $region19: #{tpu_custom_call.1} parent=1 // pred_check_branch
      %20 = sbr.rel (0) target = $region21
    $region20: #{tpu_custom_call.1} parent=1 // pred_region
      _
    $region21: #{tpu_custom_call.1} parent=1 // pred_fallthru
      _
    %v21 = vld [vmem:[%s1] sm:$0xff]
    %v22 = vld [vmem:[%s1 + $0x8] sm:$0xff]
    %v23 = vld [vmem:[%s1 + $0x10] sm:$0xff]
    %v24 = vld [vmem:[%s1 + $0x18] sm:$0xff]
    %v25 = vld [vmem:[%s3] sm:$0xff]
    %v26 = vld [vmem:[%s3 + $0x8] sm:$0xff]
    %v27 = vld [vmem:[%s2] sm:$0xff]
    %v28 = vld [vmem:[%s2 + $0x8] sm:$0xff]
    %v29 = vld [vmem:[%s2 + $0x10] sm:$0xff]
    %v30 = vld [vmem:[%s2 + $0x18] sm:$0xff]
    %v31 = vld [vmem:[%s4] sm:$0xff]
    %v32 = vld [vmem:[%s4 + $0x8] sm:$0xff]
    %v33 = vld [vmem:[%s0] sm:$0xff]
    %35 = vset.pattern.permute.xlu0 0
    %36 = vperm.xlu0 %35, %v27
    %v37 = vpop.permute.xlu0 %36
    %40 = vset.pattern.permute.xlu0 0
    %41 = vperm.xlu0 %40, %v28
    %v42 = vpop.permute.xlu0 %41
    %45 = vset.pattern.permute.xlu0 0
    %46 = vperm.xlu0 %45, %v29
    %v47 = vpop.permute.xlu0 %46
    %50 = vset.pattern.permute.xlu0 0
    %51 = vperm.xlu0 %50, %v30
    %v52 = vpop.permute.xlu0 %51
    %55 = vst [vmem:[#allocation1] ss:$2 sm:$0xff] %v33
    %v56 = vld.sshfl [vmem:[#allocation1] sm:$0xff pattern:$0x75316420]
    %v57 = vld.sshfl [vmem:[#allocation1 + $0x8] sm:$0xff pattern:$0x75316420]
    %vm58 = vcmask 31744
    %v60 = vsel %vm58, %v21, 0
    %v63 = vsel %vm58, %v22, 0
    %v66 = vsel %vm58, %v23, 0
    %v69 = vsel %vm58, %v24, 0
    %vm71 = vcmask 1043456
    %v72 = vsel %vm71, %v56, 0
    %v74 = vsel %vm71, %v57, 0
    %76 = vmatpush.msra.mxu0 0.0
    %77 = vmatpush.msra.mxu0 0.0
    %78 = vmatpush.msra.mxu0 0.0
    %79 = vmatpush.msra.mxu0 0.0
    %80 = vmatpush.msra.mxu0 0.0
    %81 = vmatpush.msra.mxu0 0.0
    %82 = vmatpush.msra.mxu0 0.0
    %83 = vmatpush.msra.mxu0 0.0
    %84 = vmatpush.msra.mxu0 0.0
    %85 = vmatpush.msra.mxu0 0.0
    %86 = vmatpush.msra.mxu0 0.0
    %87 = vmatpush.msra.mxu0 0.0
    %88 = vmatpush.msra.mxu0 0.0
    %89 = vmatpush.msra.mxu0 0.0
    %90 = vmatpush.msra.mxu0 0.0
    %91 = vmatpush.msra.mxu0 %v72
    %92 = vmatmul.f32.gmra.mxu0 %v60
    %v93 = vpop.f32.mrf.mxu0
    %v94 = vadd.f32 %v37, %v93
    %95 = vmatmul.f32.gmra.mxu0 %v63
    %v96 = vpop.f32.mrf.mxu0
    %v97 = vadd.f32 %v42, %v96
    %98 = vmatmul.f32.gmra.mxu0 %v66
    %v99 = vpop.f32.mrf.mxu0
    %v100 = vadd.f32 %v47, %v99
    %101 = vmatmul.f32.gmra.mxu0 %v69
    %v102 = vpop.f32.mrf.mxu0
    %v103 = vadd.f32 %v52, %v102
    %104 = vdwg.mxu0
    %105 = vmatpush.msra.mxu0 0.0
    %106 = vmatpush.msra.mxu0 0.0
    %107 = vmatpush.msra.mxu0 0.0
    %108 = vmatpush.msra.mxu0 0.0
    %109 = vmatpush.msra.mxu0 0.0
    %110 = vmatpush.msra.mxu0 0.0
    %111 = vmatpush.msra.mxu0 0.0
    %112 = vmatpush.msra.mxu0 0.0
    %113 = vmatpush.msra.mxu0 0.0
    %114 = vmatpush.msra.mxu0 0.0
    %115 = vmatpush.msra.mxu0 0.0
    %116 = vmatpush.msra.mxu0 0.0
    %117 = vmatpush.msra.mxu0 0.0
    %118 = vmatpush.msra.mxu0 0.0
    %119 = vmatpush.msra.mxu0 0.0
    %120 = vmatpush.msra.mxu0 %v74
    %121 = vmatmul.f32.gmra.mxu0 %v60
    %v122 = vpop.f32.mrf.mxu0
    %v123 = vadd.f32 %v37, %v122
    %124 = vmatmul.f32.gmra.mxu0 %v63
    %v125 = vpop.f32.mrf.mxu0
    %v126 = vadd.f32 %v42, %v125
    %127 = vmatmul.f32.gmra.mxu0 %v66
    %v128 = vpop.f32.mrf.mxu0
    %v129 = vadd.f32 %v47, %v128
    %130 = vmatmul.f32.gmra.mxu0 %v69
    %v131 = vpop.f32.mrf.mxu0
    %v132 = vadd.f32 %v52, %v131
    %133 = vdwg.mxu0
    %v134 = vmax.f32 %v94, 0.0
    %v135 = vmax.f32 %v123, 0.0
    %v136 = vmax.f32 %v97, 0.0
    %v137 = vmax.f32 %v126, 0.0
    %v138 = vmax.f32 %v100, 0.0
    %v139 = vmax.f32 %v129, 0.0
    %v140 = vmax.f32 %v103, 0.0
    %v141 = vmax.f32 %v132, 0.0
    %143 = vset.pattern.permute.xlu0 0
    %144 = vperm.xlu0 %143, %v31
    %v145 = vpop.permute.xlu0 %144
    %148 = vset.pattern.permute.xlu0 0
    %149 = vperm.xlu0 %148, %v32
    %v150 = vpop.permute.xlu0 %149
    %vm152 = vcmask 261120
    %v154 = vsel %vm152, %v25, 0
    %v157 = vsel %vm152, %v26, 0
    %159 = vmatpush.msra.mxu0 0.0
    %160 = vmatpush.msra.mxu0 0.0
    %161 = vmatpush.msra.mxu0 0.0
    %162 = vmatpush.msra.mxu0 0.0
    %163 = vmatpush.msra.mxu0 0.0
    %164 = vmatpush.msra.mxu0 0.0
    %165 = vmatpush.msra.mxu0 0.0
    %166 = vmatpush.msra.mxu0 0.0
    %167 = vmatpush.msra.mxu0 0.0
    %168 = vmatpush.msra.mxu0 0.0
    %169 = vmatpush.msra.mxu0 0.0
    %170 = vmatpush.msra.mxu0 0.0
    %171 = vmatpush.msra.mxu0 %v140
    %172 = vmatpush.msra.mxu0 %v138
    %173 = vmatpush.msra.mxu0 %v136
    %174 = vmatpush.msra.mxu0 %v134
    %175 = vmatmul.f32.gmra.mxu0 %v154
    %v176 = vpop.f32.mrf.mxu0
    %v177 = vadd.f32 %v145, %v176
    %178 = vmatmul.f32.gmra.mxu0 %v157
    %v179 = vpop.f32.mrf.mxu0
    %v180 = vadd.f32 %v150, %v179
    %181 = vdwg.mxu0
    %182 = vmatpush.msra.mxu0 0.0
    %183 = vmatpush.msra.mxu0 0.0
    %184 = vmatpush.msra.mxu0 0.0
    %185 = vmatpush.msra.mxu0 0.0
    %186 = vmatpush.msra.mxu0 0.0
    %187 = vmatpush.msra.mxu0 0.0
    %188 = vmatpush.msra.mxu0 0.0
    %189 = vmatpush.msra.mxu0 0.0
    %190 = vmatpush.msra.mxu0 0.0
    %191 = vmatpush.msra.mxu0 0.0
    %192 = vmatpush.msra.mxu0 0.0
    %193 = vmatpush.msra.mxu0 0.0
    %194 = vmatpush.msra.mxu0 %v141
    %195 = vmatpush.msra.mxu0 %v139
    %196 = vmatpush.msra.mxu0 %v137
    %197 = vmatpush.msra.mxu0 %v135
    %198 = vmatmul.f32.gmra.mxu0 %v154
    %v199 = vpop.f32.mrf.mxu0
    %v200 = vadd.f32 %v145, %v199
    %201 = vmatmul.f32.gmra.mxu0 %v157
    %v202 = vpop.f32.mrf.mxu0
    %v203 = vadd.f32 %v150, %v202
    %204 = vdwg.mxu0
    %v205 = vmax.f32 %v177, 0.0
    %v206 = vmax.f32 %v200, 0.0
    %v207 = vmax.f32 %v180, 0.0
    %v208 = vmax.f32 %v203, 0.0
    %209 = vst [vmem:[#allocation2] sm:$0xff] %v205
    %210 = vst [vmem:[#allocation2 + $0x8] sm:$0xff] %v206
    %211 = vst [vmem:[#allocation2 + $0x10] sm:$0xff] %v207
    %212 = vst [vmem:[#allocation2 + $0x18] sm:$0xff] %v208
    // Predicated region
    $region22: #{tpu_custom_call.1} parent=1 // pred_check
      _
    $region23: #{tpu_custom_call.1} parent=1 // pred_check_branch
      %214 = sbr.rel (0) target = $region25
    $region24: #{tpu_custom_call.1} parent=1 // pred_region
      %216 = vsyncadd [#allocation3], 0
      %s217 = sshll.u32 [#allocation2], 4
      %s218 = int_to_ptr.vmem [resolvable:$true] %s217
      %s219 = sshll.u32 %s5, 4
      %s220 = int_to_ptr.hbm [resolvable:$true] %s219
      %225 = dma.vmem_to_hbm [thread:$0]  %s218, 512, %s220, [#allocation3], 256, 256, 16
    $region25: #{tpu_custom_call.1} parent=1 // pred_fallthru
      _
    // Predicated region
    $region26: #{tpu_custom_call.1} parent=1 // pred_check
      _
    $region27: #{tpu_custom_call.1} parent=1 // pred_check_branch
      %227 = sbr.rel (0) target = $region29
    $region28: #{tpu_custom_call.1} parent=1 // pred_region
      %229 = dma.done [#allocation3], 512
    $region29: #{tpu_custom_call.1} parent=1 // pred_fallthru
      _
    %230 = vsyncpa [#allocation3], 1

</llo_original>
